<compile_context>
chip_gen: v7x
topology: tpu7x:2x2x1
jax: 0.10.0
libtpu: 0.0.40
codegen_flags: <defaults>
</compile_context>

<pallas_src>
import numpy as np
import jax
import jax.numpy as jnp
from jax.experimental import pallas as pl
from jax.experimental.pallas import tpu as pltpu


_UNROLL_C_MAX = 16            # reduce softmax dim as an unrolled VPU chain up to this size
_GENERAL_TILE_OUTER_MAX = 128  # unroll bound for the general (large-C) mid-axis kernel


def _vmem_limit_bytes() -> int:
    """Scoped-VMEM limit sized from the actual chip (64 MiB v7x, 128 MiB v5e/v6e)."""
    try:
        cap = pltpu.get_tpu_info().vmem_capacity_bytes
    except Exception:
        cap = 64 * 1024 * 1024  # conservative default (v7x per-TensorCore VMEM)
    return int(min(cap * 3 // 4, 96 * 1024 * 1024))


def _round_up(v: int, m: int) -> int:
    return ((v + m - 1) // m) * m


# -----------------------------------------------------------------------------
# Kernels
# -----------------------------------------------------------------------------
def _softmax_last_kernel(x_ref, o_ref):
    """Row-wise, numerically stable softmax over the last (lane) axis."""
    x = x_ref[...].astype(jnp.float32)
    m = jnp.max(x, axis=-1, keepdims=True)
    e = jnp.exp(x - m)
    s = jnp.sum(e, axis=-1, keepdims=True)
    o_ref[...] = (e * pl.reciprocal(s, approx=True)).astype(o_ref.dtype)


def _softmax_mid_unrolled_kernel(x_ref, o_ref):
    """Softmax over the middle (size-C) axis of a (tile_outer, C, tile_inner) block.

    C is small and static, so the reduction is an unrolled chain of
    element-wise ops on lane-dense (tile_outer, tile_inner) slabs:
    pure VPU/EUP, no cross-lane work, no masked narrow stores.
    """
    C = x_ref.shape[1]
    m = x_ref[:, 0, :].astype(jnp.float32)
    for c in range(1, C):
        m = jnp.maximum(m, x_ref[:, c, :].astype(jnp.float32))
    s = jnp.zeros_like(m)
    for c in range(C):
        e = jnp.exp(x_ref[:, c, :].astype(jnp.float32) - m)
        s = s + e
        o_ref[:, c, :] = e.astype(o_ref.dtype)
    inv = pl.reciprocal(s, approx=True)
    for c in range(C):
        o_ref[:, c, :] = (o_ref[:, c, :].astype(jnp.float32) * inv).astype(o_ref.dtype)


def _softmax_mid_general_kernel(x_ref, o_ref):
    """Softmax over the middle axis for larger C (sublane-axis reduction)."""
    for b in range(x_ref.shape[0]):           # tile_outer is static and small
        x = x_ref[b].astype(jnp.float32)      # (C, tile_inner), lane-dense
        m = jnp.max(x, axis=0, keepdims=True)
        e = jnp.exp(x - m)
        s = jnp.sum(e, axis=0, keepdims=True)
        o_ref[b] = (e * pl.reciprocal(s, approx=True)).astype(o_ref.dtype)


# -----------------------------------------------------------------------------
# Wrapper
# -----------------------------------------------------------------------------
def my_act2_pallas(x, dim):
    """Pallas TPU equivalent of torch.nn.functional.softmax(x, dim)."""
    ndim = x.ndim
    dim = dim % ndim
    shape = x.shape
    C = int(shape[dim])
    outer = int(np.prod(shape[:dim], dtype=np.int64)) if dim > 0 else 1
    inner = int(np.prod(shape[dim + 1:], dtype=np.int64)) if dim + 1 < ndim else 1

    limit = _vmem_limit_bytes()
    block_budget = limit // 8   # headroom: double-buffered in+out + f32 temporaries
    itemsize = 4                # budget in f32 terms (kernel computes in f32)

    if inner == 1:
        # ------------------------------------------------------------------
        # Softmax dim is (equivalent to) the last axis: lane-axis reduction.
        # ------------------------------------------------------------------
        rows, D = outer, C
        x2 = x.reshape(rows, D)
        budget_rows = max(1, block_budget // (D * itemsize))
        if rows <= budget_rows:
            if rows >= 16:
                # split so the grid has >= 2 blocks (keeps both v7x TCs busy)
                tile_rows = _round_up(pl.cdiv(rows, 2), 8)
            else:
                tile_rows = rows
        else:
            # TODO(synk): for vocab-scale D, split D across an "arbitrary" grid
            # axis with an online (flash-style) running max/sum instead of a
            # tall full-D block.
            tile_rows = max(8, (budget_rows // 8) * 8)
        grid = (pl.cdiv(rows, tile_rows),)
        out2 = pl.pallas_call(
            _softmax_last_kernel,
            out_shape=jax.ShapeDtypeStruct((rows, D), x.dtype),
            grid_spec=pl.GridSpec(
                grid=grid,
                in_specs=[pl.BlockSpec((tile_rows, D), lambda i: (i, 0))],
                out_specs=pl.BlockSpec((tile_rows, D), lambda i: (i, 0)),
            ),
            compiler_params=pltpu.CompilerParams(
                dimension_semantics=("parallel",),
                vmem_limit_bytes=limit,
            ),
        )(x2)
        return out2.reshape(shape)

    # ----------------------------------------------------------------------
    # Softmax dim is an interior/leading axis: keep `inner` lane-dense as the
    # last axis (no transposes) and reduce over the middle C axis in-kernel.
    # ----------------------------------------------------------------------
    x3 = x.reshape(outer, C, inner)

    if C * inner * itemsize <= block_budget or inner <= 128:
        tile_inner = inner
    else:
        tile_inner = max(128, (block_budget // (C * itemsize) // 128) * 128)

    per_outer_bytes = C * tile_inner * itemsize
    tile_outer = max(1, min(outer, block_budget // max(per_outer_bytes, 1)))
    if C > _UNROLL_C_MAX:
        tile_outer = min(tile_outer, _GENERAL_TILE_OUTER_MAX)
    # keep >= 2 grid blocks when the shape allows it (two v7x TensorCores)
    if tile_outer >= outer and outer > 1 and tile_inner >= inner:
        tile_outer = pl.cdiv(outer, 2)

    grid = (pl.cdiv(outer, tile_outer), pl.cdiv(inner, tile_inner))
    kernel = (_softmax_mid_unrolled_kernel if C <= _UNROLL_C_MAX
              else _softmax_mid_general_kernel)

    out3 = pl.pallas_call(
        kernel,
        out_shape=jax.ShapeDtypeStruct((outer, C, inner), x.dtype),
        grid_spec=pl.GridSpec(
            grid=grid,
            in_specs=[pl.BlockSpec((tile_outer, C, tile_inner),
                                   lambda i, j: (i, 0, j))],
            out_specs=pl.BlockSpec((tile_outer, C, tile_inner),
                                   lambda i, j: (i, 0, j)),
        ),
        compiler_params=pltpu.CompilerParams(
            dimension_semantics=("parallel", "parallel"),
            vmem_limit_bytes=limit,
        ),
    )(x3)
    return out3.reshape(shape)


if __name__ == "__main__":
    key = jax.random.PRNGKey(0)

    # my_act2 has no learnable parameters; only the softmax dim is configured.
    # Homework config: NCHW input, softmax over the channel axis (dim=1).
    dim = 1
    x = jax.random.normal(key, (2, 4, 16, 16), dtype=jnp.float32)
    out = jax.block_until_ready(my_act2_pallas(x, dim))
    ref = jax.nn.softmax(x, axis=dim)
    # tolerance covers the EUP approximate-reciprocal normalization
    np.testing.assert_allclose(np.asarray(out), np.asarray(ref), rtol=2e-3, atol=2e-3)

    # Exercise the other kernel paths (last-axis, leading-axis, larger-C).
    for shape, d in [((2, 4, 16, 16), -1),
                     ((2, 4, 16, 16), 0),
                     ((4, 48, 64), 1),
                     ((8, 200), 1)]:
        key, sub = jax.random.split(key)
        xt = jax.random.normal(sub, shape, dtype=jnp.float32)
        got = jax.block_until_ready(my_act2_pallas(xt, d))
        want = jax.nn.softmax(xt, axis=d)
        np.testing.assert_allclose(np.asarray(got), np.asarray(want),
                                   rtol=2e-3, atol=2e-3)

    print("KERNEL_OK")
</pallas_src>

<mosaic_0001>
module attributes {stable_mosaic.version = 11 : i64} {
  func.func @_softmax_mid_unrolled_kernel(%arg0: i32, %arg1: i32, %arg2: memref<1x4x256xf32, #tpu.memory_space<vmem>>, %arg3: memref<1x4x256xf32, #tpu.memory_space<vmem>>) attributes {dimension_semantics = [#tpu.dimension_semantics<parallel>, #tpu.dimension_semantics<parallel>], iteration_bounds = array<i64: 2, 1>, scalar_prefetch = 0 : i64, scratch_operands = 0 : i64, tpu.core_type = #tpu.core_type<tc>, window_params = [{transform_indices = @transform_0, window_bounds = array<i64: 1, 4, 256>}, {transform_indices = @transform_1, window_bounds = array<i64: 1, 4, 256>}]} {
    %c0 = arith.constant 0 : index
    %c0_0 = arith.constant 0 : index
    %c0_1 = arith.constant 0 : index
    %0 = vector.load %arg2[%c0, %c0_0, %c0_1] : memref<1x4x256xf32, #tpu.memory_space<vmem>>, vector<1x1x256xf32>
    %1 = vector.shape_cast %0 : vector<1x1x256xf32> to vector<1x256xf32>
    %c0_2 = arith.constant 0 : index
    %c1 = arith.constant 1 : index
    %c0_3 = arith.constant 0 : index
    %2 = vector.load %arg2[%c0_2, %c1, %c0_3] : memref<1x4x256xf32, #tpu.memory_space<vmem>>, vector<1x1x256xf32>
    %3 = vector.shape_cast %2 : vector<1x1x256xf32> to vector<1x256xf32>
    %4 = arith.maximumf %1, %3 : vector<1x256xf32>
    %c0_4 = arith.constant 0 : index
    %c2 = arith.constant 2 : index
    %c0_5 = arith.constant 0 : index
    %5 = vector.load %arg2[%c0_4, %c2, %c0_5] : memref<1x4x256xf32, #tpu.memory_space<vmem>>, vector<1x1x256xf32>
    %6 = vector.shape_cast %5 : vector<1x1x256xf32> to vector<1x256xf32>
    %7 = arith.maximumf %4, %6 : vector<1x256xf32>
    %c0_6 = arith.constant 0 : index
    %c3 = arith.constant 3 : index
    %c0_7 = arith.constant 0 : index
    %8 = vector.load %arg2[%c0_6, %c3, %c0_7] : memref<1x4x256xf32, #tpu.memory_space<vmem>>, vector<1x1x256xf32>
    %9 = vector.shape_cast %8 : vector<1x1x256xf32> to vector<1x256xf32>
    %10 = arith.maximumf %7, %9 : vector<1x256xf32>
    %cst = arith.constant 0.000000e+00 : f32
    %11 = vector.broadcast %cst : f32 to vector<1x256xf32>
    %c0_8 = arith.constant 0 : index
    %c0_9 = arith.constant 0 : index
    %c0_10 = arith.constant 0 : index
    %12 = vector.load %arg2[%c0_8, %c0_9, %c0_10] : memref<1x4x256xf32, #tpu.memory_space<vmem>>, vector<1x1x256xf32>
    %13 = vector.shape_cast %12 : vector<1x1x256xf32> to vector<1x256xf32>
    %14 = arith.subf %13, %10 : vector<1x256xf32>
    %15 = math.exp %14 : vector<1x256xf32>
    %16 = arith.addf %11, %15 : vector<1x256xf32>
    %c0_11 = arith.constant 0 : index
    %c0_12 = arith.constant 0 : index
    %c0_13 = arith.constant 0 : index
    %17 = vector.load %arg3[%c0_11, %c0_12, %c0_13] : memref<1x4x256xf32, #tpu.memory_space<vmem>>, vector<1x1x256xf32>
    %18 = vector.shape_cast %17 : vector<1x1x256xf32> to vector<1x256xf32>
    %19 = vector.shape_cast %15 : vector<1x256xf32> to vector<1x1x256xf32>
    tpu.vector_store %arg3[%c0_11, %c0_12, %c0_13], %19 {strides = array<i32>} : memref<1x4x256xf32, #tpu.memory_space<vmem>>, vector<1x1x256xf32>,
    %c0_14 = arith.constant 0 : index
    %c1_15 = arith.constant 1 : index
    %c0_16 = arith.constant 0 : index
    %20 = vector.load %arg2[%c0_14, %c1_15, %c0_16] : memref<1x4x256xf32, #tpu.memory_space<vmem>>, vector<1x1x256xf32>
    %21 = vector.shape_cast %20 : vector<1x1x256xf32> to vector<1x256xf32>
    %22 = arith.subf %21, %10 : vector<1x256xf32>
    %23 = math.exp %22 : vector<1x256xf32>
    %24 = arith.addf %16, %23 : vector<1x256xf32>
    %c0_17 = arith.constant 0 : index
    %c1_18 = arith.constant 1 : index
    %c0_19 = arith.constant 0 : index
    %25 = vector.load %arg3[%c0_17, %c1_18, %c0_19] : memref<1x4x256xf32, #tpu.memory_space<vmem>>, vector<1x1x256xf32>
    %26 = vector.shape_cast %25 : vector<1x1x256xf32> to vector<1x256xf32>
    %27 = vector.shape_cast %23 : vector<1x256xf32> to vector<1x1x256xf32>
    tpu.vector_store %arg3[%c0_17, %c1_18, %c0_19], %27 {strides = array<i32>} : memref<1x4x256xf32, #tpu.memory_space<vmem>>, vector<1x1x256xf32>,
    %c0_20 = arith.constant 0 : index
    %c2_21 = arith.constant 2 : index
    %c0_22 = arith.constant 0 : index
    %28 = vector.load %arg2[%c0_20, %c2_21, %c0_22] : memref<1x4x256xf32, #tpu.memory_space<vmem>>, vector<1x1x256xf32>
    %29 = vector.shape_cast %28 : vector<1x1x256xf32> to vector<1x256xf32>
    %30 = arith.subf %29, %10 : vector<1x256xf32>
    %31 = math.exp %30 : vector<1x256xf32>
    %32 = arith.addf %24, %31 : vector<1x256xf32>
    %c0_23 = arith.constant 0 : index
    %c2_24 = arith.constant 2 : index
    %c0_25 = arith.constant 0 : index
    %33 = vector.load %arg3[%c0_23, %c2_24, %c0_25] : memref<1x4x256xf32, #tpu.memory_space<vmem>>, vector<1x1x256xf32>
    %34 = vector.shape_cast %33 : vector<1x1x256xf32> to vector<1x256xf32>
    %35 = vector.shape_cast %31 : vector<1x256xf32> to vector<1x1x256xf32>
    tpu.vector_store %arg3[%c0_23, %c2_24, %c0_25], %35 {strides = array<i32>} : memref<1x4x256xf32, #tpu.memory_space<vmem>>, vector<1x1x256xf32>,
    %c0_26 = arith.constant 0 : index
    %c3_27 = arith.constant 3 : index
    %c0_28 = arith.constant 0 : index
    %36 = vector.load %arg2[%c0_26, %c3_27, %c0_28] : memref<1x4x256xf32, #tpu.memory_space<vmem>>, vector<1x1x256xf32>
    %37 = vector.shape_cast %36 : vector<1x1x256xf32> to vector<1x256xf32>
    %38 = arith.subf %37, %10 : vector<1x256xf32>
    %39 = math.exp %38 : vector<1x256xf32>
    %40 = arith.addf %32, %39 : vector<1x256xf32>
    %c0_29 = arith.constant 0 : index
    %c3_30 = arith.constant 3 : index
    %c0_31 = arith.constant 0 : index
    %41 = vector.load %arg3[%c0_29, %c3_30, %c0_31] : memref<1x4x256xf32, #tpu.memory_space<vmem>>, vector<1x1x256xf32>
    %42 = vector.shape_cast %41 : vector<1x1x256xf32> to vector<1x256xf32>
    %43 = vector.shape_cast %39 : vector<1x256xf32> to vector<1x1x256xf32>
    tpu.vector_store %arg3[%c0_29, %c3_30, %c0_31], %43 {strides = array<i32>} : memref<1x4x256xf32, #tpu.memory_space<vmem>>, vector<1x1x256xf32>,
    %44 = tpu.reciprocal %40 {approx = true} : vector<1x256xf32> -> vector<1x256xf32>
    %c0_32 = arith.constant 0 : index
    %c0_33 = arith.constant 0 : index
    %c0_34 = arith.constant 0 : index
    %45 = vector.load %arg3[%c0_32, %c0_33, %c0_34] : memref<1x4x256xf32, #tpu.memory_space<vmem>>, vector<1x1x256xf32>
    %46 = vector.shape_cast %45 : vector<1x1x256xf32> to vector<1x256xf32>
    %47 = arith.mulf %46, %44 : vector<1x256xf32>
    %c0_35 = arith.constant 0 : index
    %c0_36 = arith.constant 0 : index
    %c0_37 = arith.constant 0 : index
    %48 = vector.load %arg3[%c0_35, %c0_36, %c0_37] : memref<1x4x256xf32, #tpu.memory_space<vmem>>, vector<1x1x256xf32>
    %49 = vector.shape_cast %48 : vector<1x1x256xf32> to vector<1x256xf32>
    %50 = vector.shape_cast %47 : vector<1x256xf32> to vector<1x1x256xf32>
    tpu.vector_store %arg3[%c0_35, %c0_36, %c0_37], %50 {strides = array<i32>} : memref<1x4x256xf32, #tpu.memory_space<vmem>>, vector<1x1x256xf32>,
    %c0_38 = arith.constant 0 : index
    %c1_39 = arith.constant 1 : index
    %c0_40 = arith.constant 0 : index
    %51 = vector.load %arg3[%c0_38, %c1_39, %c0_40] : memref<1x4x256xf32, #tpu.memory_space<vmem>>, vector<1x1x256xf32>
    %52 = vector.shape_cast %51 : vector<1x1x256xf32> to vector<1x256xf32>
    %53 = arith.mulf %52, %44 : vector<1x256xf32>
    %c0_41 = arith.constant 0 : index
    %c1_42 = arith.constant 1 : index
    %c0_43 = arith.constant 0 : index
    %54 = vector.load %arg3[%c0_41, %c1_42, %c0_43] : memref<1x4x256xf32, #tpu.memory_space<vmem>>, vector<1x1x256xf32>
    %55 = vector.shape_cast %54 : vector<1x1x256xf32> to vector<1x256xf32>
    %56 = vector.shape_cast %53 : vector<1x256xf32> to vector<1x1x256xf32>
    tpu.vector_store %arg3[%c0_41, %c1_42, %c0_43], %56 {strides = array<i32>} : memref<1x4x256xf32, #tpu.memory_space<vmem>>, vector<1x1x256xf32>,
    %c0_44 = arith.constant 0 : index
    %c2_45 = arith.constant 2 : index
    %c0_46 = arith.constant 0 : index
    %57 = vector.load %arg3[%c0_44, %c2_45, %c0_46] : memref<1x4x256xf32, #tpu.memory_space<vmem>>, vector<1x1x256xf32>
    %58 = vector.shape_cast %57 : vector<1x1x256xf32> to vector<1x256xf32>
    %59 = arith.mulf %58, %44 : vector<1x256xf32>
    %c0_47 = arith.constant 0 : index
    %c2_48 = arith.constant 2 : index
    %c0_49 = arith.constant 0 : index
    %60 = vector.load %arg3[%c0_47, %c2_48, %c0_49] : memref<1x4x256xf32, #tpu.memory_space<vmem>>, vector<1x1x256xf32>
    %61 = vector.shape_cast %60 : vector<1x1x256xf32> to vector<1x256xf32>
    %62 = vector.shape_cast %59 : vector<1x256xf32> to vector<1x1x256xf32>
    tpu.vector_store %arg3[%c0_47, %c2_48, %c0_49], %62 {strides = array<i32>} : memref<1x4x256xf32, #tpu.memory_space<vmem>>, vector<1x1x256xf32>,
    %c0_50 = arith.constant 0 : index
    %c3_51 = arith.constant 3 : index
    %c0_52 = arith.constant 0 : index
    %63 = vector.load %arg3[%c0_50, %c3_51, %c0_52] : memref<1x4x256xf32, #tpu.memory_space<vmem>>, vector<1x1x256xf32>
    %64 = vector.shape_cast %63 : vector<1x1x256xf32> to vector<1x256xf32>
    %65 = arith.mulf %64, %44 : vector<1x256xf32>
    %c0_53 = arith.constant 0 : index
    %c3_54 = arith.constant 3 : index
    %c0_55 = arith.constant 0 : index
    %66 = vector.load %arg3[%c0_53, %c3_54, %c0_55] : memref<1x4x256xf32, #tpu.memory_space<vmem>>, vector<1x1x256xf32>
    %67 = vector.shape_cast %66 : vector<1x1x256xf32> to vector<1x256xf32>
    %68 = vector.shape_cast %65 : vector<1x256xf32> to vector<1x1x256xf32>
    tpu.vector_store %arg3[%c0_53, %c3_54, %c0_55], %68 {strides = array<i32>} : memref<1x4x256xf32, #tpu.memory_space<vmem>>, vector<1x1x256xf32>,
    return
  }
  func.func @transform_0(%arg0: i32, %arg1: i32) -> (i32, i32, i32) {
    %c0_i32 = arith.constant 0 : i32
    %c0_i32_0 = arith.constant 0 : i32
    return %arg0, %c0_i32, %arg1 : i32, i32, i32
  }
  func.func @transform_1(%arg0: i32, %arg1: i32) -> (i32, i32, i32) {
    %c0_i32 = arith.constant 0 : i32
    %c0_i32_0 = arith.constant 0 : i32
    return %arg0, %c0_i32, %arg1 : i32, i32, i32
  }
}

</mosaic_0001>

<llo_original>
// kernel: tpu_custom_call.1
$region0: #{tpu_custom_call.1}
  #allocation0 [shape = 'u32[]', space=smem, size = 0x4, offset = 0x4, fixed_abs, tag = 'smem constant byte address 0x4 - core index']
  #allocation1 [shape = 'u32[144,128]{1,0:T(1,128)}', space=vmem, size = 0x12000, scoped, tag = 'internal scratch']
  %s0 = inlined_call_operand.hbm [shape: f32[2,4,256], index: 0, kind: input, shape index: {}]
  %s1 = inlined_call_operand.hbm [shape: f32[2,4,256], index: 1, kind: output, shape index: {}]
  %s2 = sld [smem:[#allocation0]]
  $region41: #{tpu_custom_call.1} parent=0
    _
  %s4 = ssub.s32 1, %s2
  %s5 = scalar_select 0, %s4, %s2
  $region1: #{tpu_custom_call.1} parent=0
    #allocation2 [shape = 'u8[8192]{0}', space=vmem, size = 0x2000, scoped, tag = 'input window, operand 0']
    #allocation3 [shape = 's32[2]{0}', space=sflag, size = 0x8, scoped, tag = 'scoped memory for tpu_custom_call.1']
    #allocation4 [shape = 's32[2]{0}', space=sflag, size = 0x8, scoped, tag = 'scoped memory for tpu_custom_call.1']
    #allocation5 [shape = 'u8[8192]{0}', space=vmem, size = 0x2000, scoped, tag = 'output window, operand 0']
    %6 = vsyncpa [#allocation3], 0
    %s7 = scalar_lea.sflag [#allocation3], 1
    %8 = vsyncpa %s7, 0
    %9 = vsyncpa [#allocation4], 0
    %s10 = scalar_lea.sflag [#allocation4], 1
    %11 = vsyncpa %s10, 0
    loop: start=0, step=1, limit=4
    $region2: #{tpu_custom_call.1} parent=1 // loop_pre_header
      _
    $region3: #{tpu_custom_call.1} parent=1 // loop_header
      %s13 = sphi 0, %s17
      %p14 = scmp.ge.s32.totalorder %s13, 4
      %s20 = sphi 0, %s32
      %s21 = sphi 0, %s28
      %s22 = sphi 0, %s20
      %s23 = sphi 0, %s21
      %s24 = sphi 0, %s22
      %s25 = sphi 0, %s23
      %s37 = sphi 0, %s39
      %s40 = sphi 0, %s37
      %s41 = sphi 0, %s40
      %s57 = sphi 0, %s41
      %s65 = sphi 0, %s67
      %s68 = sphi 0, %s65
      %s69 = sphi 0, %s68
      %s85 = sphi 0, %s69
    $region4: #{tpu_custom_call.1} parent=1 // loop_header_branch
      %16 = sbr.rel (%p14) target = $region8
    $region5: #{tpu_custom_call.1} parent=1 // loop_body
      %s18 = ssub.s32 %s13, 1
      %s19 = ssub.s32 %s13, 2
      %s26 = sadd.s32 1, %s21
      %p27 = scmp.ge.s32.totalorder %s26, 1
      %s28 = scalar_select %p27, 0, %s26
      %s29 = sadd.s32 1, %s20
      %s30 = scalar_select %p27, %s29, %s20
      %p31 = scmp.ge.s32.totalorder %s30, 2
      %s32 = scalar_select %p31, 0, %s30
      %s33 = ssub.s32 %s20, %s32
      %s34 = ssub.s32 %s21, %s28
      %s35 = sor.u32 %s33, %s34
      %p36 = scmp.eq.s32.totalorder %s35, 0
      %s38 = sadd.s32 %s37, 1
      %s39 = scalar_select %p36, %s37, %s38
      %p42 = pneg %p36
      %p43 = scmp.eq.s32.totalorder %s13, 1
      %p44 = por %p42, %p43
      %p45 = scmp.ne.s32.totalorder %s37, %s40
      %p46 = scmp.eq.s32.totalorder %s13, 0
      %p47 = por %p45, %p46
      %p48 = scmp.ne.s32.totalorder %s37, %s40
      %p49 = scmp.eq.s32.totalorder %s18, 1
      %p50 = por %p48, %p49
      %p51 = scmp.ne.s32.totalorder %s40, %s41
      %p52 = scmp.eq.s32.totalorder %s18, 0
      %p53 = por %p51, %p52
      %p54 = scmp.ne.s32.totalorder %s40, %s41
      %p55 = scmp.eq.s32.totalorder %s19, 1
      %p56 = por %p54, %p55
      %p58 = scmp.ne.s32.totalorder %s41, %s57
      %p59 = scmp.eq.s32.totalorder %s19, 0
      %p60 = por %p58, %p59
      %s61 = ssub.s32 %s20, %s32
      %s62 = ssub.s32 %s21, %s28
      %s63 = sor.u32 %s61, %s62
      %p64 = scmp.eq.s32.totalorder %s63, 0
      %s66 = sadd.s32 %s65, 1
      %s67 = scalar_select %p64, %s65, %s66
      %p70 = pneg %p64
      %p71 = scmp.eq.s32.totalorder %s13, 1
      %p72 = por %p70, %p71
      %p73 = scmp.ne.s32.totalorder %s65, %s68
      %p74 = scmp.eq.s32.totalorder %s13, 0
      %p75 = por %p73, %p74
      %p76 = scmp.ne.s32.totalorder %s65, %s68
      %p77 = scmp.eq.s32.totalorder %s18, 1
      %p78 = por %p76, %p77
      %p79 = scmp.ne.s32.totalorder %s68, %s69
      %p80 = scmp.eq.s32.totalorder %s18, 0
      %p81 = por %p79, %p80
      %p82 = scmp.ne.s32.totalorder %s68, %s69
      %p83 = scmp.eq.s32.totalorder %s19, 1
      %p84 = por %p82, %p83
      %p86 = scmp.ne.s32.totalorder %s69, %s85
      %p87 = scmp.eq.s32.totalorder %s19, 0
      %p88 = por %p86, %p87
      %p89 = scmp.le.s32.totalorder 1, %s13
      %p90 = scmp.lt.s32.totalorder %s13, 3
      %p91 = pnand %p89, %p90
      %p92 = pneg %p91
      // Predicated region
      $region9: #{tpu_custom_call.1} parent=5 // pred_check
        _
      $region10: #{tpu_custom_call.1} parent=5 // pred_check_branch
        %94 = sbr.rel (%p91) target = $region12
      $region11: #{tpu_custom_call.1} parent=5 // pred_region
        %s95 = ssub.s32 %s13, 1
      $region12: #{tpu_custom_call.1} parent=5 // pred_fallthru
        _
      %p96 = scmp.lt.s32.totalorder %s13, 2
      // Predicated region
      $region13: #{tpu_custom_call.1} parent=5 // pred_check
        %p97 = pneg %p96
      $region14: #{tpu_custom_call.1} parent=5 // pred_check_branch
        %99 = sbr.rel (%p97) target = $region16
      $region15: #{tpu_custom_call.1} parent=5 // pred_region
        // Predicated region
        $region17: #{tpu_custom_call.1} parent=15 // pred_check
          %p100 = pneg %p47
        $region18: #{tpu_custom_call.1} parent=15 // pred_check_branch
          %102 = sbr.rel (%p100) target = $region20
        $region19: #{tpu_custom_call.1} parent=15 // pred_region
          %s103 = sand.u32 %s37, 1
          %s104 = scalar_lea.sflag [#allocation3], %s103
          %s105 = sand.u32 %s37, 1
          %s106 = smul.addr %s105, 8
          %s107 = scalar_lea.vmem [#allocation2], %s106
          %s108 = smul.u32 2, %s21
          %s110 = ssub.s32 128, 128
          %111 = vsyncadd %s104, %s110
          %s112 = smul.addr %s20, 2
          %s113 = sadd.s32 %s108, %s112
          %s114 = smul.addr %s113, 64
          %s115 = scalar_lea.hbm %s0, %s114
          %s117 = sshll.u32 %s107, 4
          %s118 = int_to_ptr.vmem [resolvable:$true] %s117
          %120 = dma.hbm_to_vmem [thread:$0]  %s115, 128, %s118, %s104
        $region20: #{tpu_custom_call.1} parent=15 // pred_fallthru
          _
      $region16: #{tpu_custom_call.1} parent=5 // pred_fallthru
        _
      %p121 = scmp.le.s32.totalorder 1, %s13
      %p122 = scmp.lt.s32.totalorder %s13, 3
      %p123 = pnand %p121, %p122
      %p124 = pneg %p123
      // Predicated region
      $region21: #{tpu_custom_call.1} parent=5 // pred_check
        _
      $region22: #{tpu_custom_call.1} parent=5 // pred_check_branch
        %126 = sbr.rel (%p123) target = $region24
      $region23: #{tpu_custom_call.1} parent=5 // pred_region
        %s127 = ssub.s32 %s13, 1
        %s128 = sand.u32 %s40, 1
        %s129 = scalar_lea.sflag [#allocation3], %s128
        %s130 = sand.u32 %s40, 1
        %s131 = smul.addr %s130, 8
        %s132 = scalar_lea.vmem [#allocation2], %s131
        // Predicated region
        $region25: #{tpu_custom_call.1} parent=23 // pred_check
          %p133 = pneg %p53
        $region26: #{tpu_custom_call.1} parent=23 // pred_check_branch
          %135 = sbr.rel (%p133) target = $region28
        $region27: #{tpu_custom_call.1} parent=23 // pred_region
          %136 = dma.done %s129, 128
        $region28: #{tpu_custom_call.1} parent=23 // pred_fallthru
          _
        %s137 = sand.u32 %s40, 1
        %s138 = scalar_lea.sflag [#allocation3], %s137
        %s139 = sand.u32 %s40, 1
        %s140 = smul.addr %s139, 8
        %s141 = scalar_lea.vmem [#allocation2], %s140
        %p142 = pneg %p53
        %p143 = pneg %p50
        %p144 = pneg %p81
        %p145 = pneg %p78
        %s146 = sand.u32 %s68, 1
        %s147 = scalar_lea.sflag [#allocation4], %s146
        %s148 = sand.u32 %s68, 1
        %s149 = smul.addr %s148, 8
        %s150 = scalar_lea.vmem [#allocation5], %s149
        %s151 = smul.u32 2, %s23
        %s152 = smul.u32 2, %s23
        %v153 = vld [vmem:[%s132] ss:$4 sm:$0x3]
        %s154 = scalar_lea.vmem %s132, 1 [#allocation2]
        %v155 = vld [vmem:[%s154] ss:$4 sm:$0x3]
        %v156 = vmax.f32 %v153, %v155
        %s157 = scalar_lea.vmem %s132, 2 [#allocation2]
        %v158 = vld [vmem:[%s157] ss:$4 sm:$0x3]
        %v159 = vmax.f32 %v156, %v158
        %s160 = scalar_lea.vmem %s132, 3 [#allocation2]
        %v161 = vld [vmem:[%s160] ss:$4 sm:$0x3]
        %v162 = vmax.f32 %v159, %v161
        %v163 = vsub.f32 %v153, %v162
        %v164 = vmul.f32 %v163, 1.442695
        %v165 = vpow.pop %v164
        %v166 = vadd.f32 %v165, 0.0
        %v167 = vlaneseq
        %vm168 = vcmp.ge.s32.totalorder %v167, 0
        %vm169 = vcmp.lt.s32.totalorder %v167, 256
        %vm170 = vmand %vm168, %vm169
        %171 = vst.msk [vmem:[%s150] ss:$4 sm:$0x3] %vm170, %v165
        %v172 = vld [vmem:[%s154] ss:$4 sm:$0x3]
        %v173 = vsub.f32 %v172, %v162
        %v174 = vmul.f32 %v173, 1.442695
        %v175 = vpow.pop %v174
        %v176 = vadd.f32 %v166, %v175
        %s177 = scalar_lea.vmem %s150, 1 [#allocation5]
        %178 = vst.msk [vmem:[%s177] ss:$4 sm:$0x3] %vm170, %v175
        %v179 = vld [vmem:[%s157] ss:$4 sm:$0x3]
        %v180 = vsub.f32 %v179, %v162
        %v181 = vmul.f32 %v180, 1.442695
        %v182 = vpow.pop %v181
        %v183 = vadd.f32 %v176, %v182
        %s184 = scalar_lea.vmem %s150, 2 [#allocation5]
        %185 = vst.msk [vmem:[%s184] ss:$4 sm:$0x3] %vm170, %v182
        %v186 = vld [vmem:[%s160] ss:$4 sm:$0x3]
        %v187 = vsub.f32 %v186, %v162
        %v188 = vmul.f32 %v187, 1.442695
        %v189 = vpow.pop %v188
        %v190 = vadd.f32 %v183, %v189
        %s191 = scalar_lea.vmem %s150, 3 [#allocation5]
        %192 = vst.msk [vmem:[%s191] ss:$4 sm:$0x3] %vm170, %v189
        %v193 = vrcp.pop %v190
        %v194 = vld [vmem:[%s150] ss:$4 sm:$0x3]
        %v195 = vmul.f32 %v194, %v193
        %196 = vst.msk [vmem:[%s150] ss:$4 sm:$0x3] %vm170, %v195
        %v197 = vld [vmem:[%s177] ss:$4 sm:$0x3]
        %v198 = vmul.f32 %v197, %v193
        %199 = vst.msk [vmem:[%s177] ss:$4 sm:$0x3] %vm170, %v198
        %v200 = vld [vmem:[%s184] ss:$4 sm:$0x3]
        %v201 = vmul.f32 %v200, %v193
        %202 = vst.msk [vmem:[%s184] ss:$4 sm:$0x3] %vm170, %v201
        %v203 = vld [vmem:[%s191] ss:$4 sm:$0x3]
        %v204 = vmul.f32 %v203, %v193
        %205 = vst.msk [vmem:[%s191] ss:$4 sm:$0x3] %vm170, %v204
        %s206 = sand.u32 %s68, 1
        %s207 = scalar_lea.sflag [#allocation4], %s206
        %s208 = sand.u32 %s68, 1
        %s209 = smul.addr %s208, 8
        %s210 = scalar_lea.vmem [#allocation5], %s209
        // Predicated region
        $region29: #{tpu_custom_call.1} parent=23 // pred_check
          %p211 = pneg %p78
        $region30: #{tpu_custom_call.1} parent=23 // pred_check_branch
          %213 = sbr.rel (%p211) target = $region32
        $region31: #{tpu_custom_call.1} parent=23 // pred_region
          %s214 = smul.u32 2, %s23
          %s216 = ssub.s32 128, 128
          %217 = vsyncadd %s207, %s216
          %s218 = smul.addr %s22, 2
          %s219 = sadd.s32 %s214, %s218
          %s220 = smul.addr %s219, 64
          %s221 = scalar_lea.hbm %s1, %s220
          %s223 = sshll.u32 %s210, 4
          %s224 = int_to_ptr.vmem [resolvable:$true] %s223
          %226 = dma.vmem_to_hbm [thread:$0]  %s224, 128, %s221, %s207
        $region32: #{tpu_custom_call.1} parent=23 // pred_fallthru
          _
      $region24: #{tpu_custom_call.1} parent=5 // pred_fallthru
        _
      %p227 = scmp.le.s32.totalorder 2, %s13
      // Predicated region
      $region33: #{tpu_custom_call.1} parent=5 // pred_check
        %p228 = pneg %p227
      $region34: #{tpu_custom_call.1} parent=5 // pred_check_branch
        %230 = sbr.rel (%p228) target = $region36
      $region35: #{tpu_custom_call.1} parent=5 // pred_region
        %s231 = ssub.s32 %s13, 2
        // Predicated region
        $region37: #{tpu_custom_call.1} parent=35 // pred_check
          %p232 = pneg %p84
        $region38: #{tpu_custom_call.1} parent=35 // pred_check_branch
          %234 = sbr.rel (%p232) target = $region40
        $region39: #{tpu_custom_call.1} parent=35 // pred_region
          %s235 = sand.u32 %s69, 1
          %s236 = scalar_lea.sflag [#allocation4], %s235
          %s237 = sand.u32 %s69, 1
          %s238 = smul.addr %s237, 8
          %s239 = scalar_lea.vmem [#allocation5], %s238
          %240 = dma.done %s236, 128
        $region40: #{tpu_custom_call.1} parent=35 // pred_fallthru
          _
      $region36: #{tpu_custom_call.1} parent=5 // pred_fallthru
        _
    $region6: #{tpu_custom_call.1} parent=1 // loop_footer
      %s17 = sadd.s32 1, %s13
    $region7: #{tpu_custom_call.1} parent=1 // loop_footer_branch
      %12 = sbr.rel target = $region3
    $region8: #{tpu_custom_call.1} parent=1 // loop_exit
      _
    %241 = vsyncpa [#allocation3], 1
    %s242 = scalar_lea.sflag [#allocation3], 1
    %243 = vsyncpa %s242, 1
    %244 = vsyncpa [#allocation4], 1
    %s245 = scalar_lea.sflag [#allocation4], 1
    %246 = vsyncpa %s245, 1

</llo_original>
